<compile_context>
chip_gen: v7x
topology: tpu7x:2x2x1
jax: 0.10.0
libtpu: 0.0.40
codegen_flags: <defaults>
</compile_context>

<pallas_src>
import jax
import jax.numpy as jnp
from jax.experimental import pallas as pl
from jax.experimental.pallas import tpu as pltpu


def _round_up(n, m):
    return ((n + m - 1) // m) * m


def _sigmoid_f32(x):
    # sigmoid(x) == 0.5 * tanh(0.5 * x) + 0.5  -> single EUP op per element.
    return 0.5 * jnp.tanh(0.5 * x) + 0.5


def _mlp_kernel(x_ref, w1_ref, b1_ref, w2_ref, b2_ref, w3_ref, b3_ref, o_ref):
    mx = w1_ref.dtype  # matmul operand dtype (bf16 or f32); accumulation always f32
    # layer 1: Linear + sigmoid
    h = jnp.dot(x_ref[...].astype(mx), w1_ref[...], preferred_element_type=jnp.float32)
    h = _sigmoid_f32(h + b1_ref[...])
    # layer 2: Linear + sigmoid
    h = jnp.dot(h.astype(mx), w2_ref[...], preferred_element_type=jnp.float32)
    h = _sigmoid_f32(h + b2_ref[...])
    # output layer: Linear (no activation)
    out = jnp.dot(h.astype(mx), w3_ref[...], preferred_element_type=jnp.float32) + b3_ref[...]
    o_ref[...] = out.astype(o_ref.dtype)


def _chip_info():
    kind = ""
    try:
        kind = getattr(jax.devices()[0], "device_kind", "") or ""
        kind = kind.lower()
    except Exception:
        pass
    is_v7 = "v7" in kind
    num_tc = 2 if is_v7 else 1
    return is_v7, num_tc


def net_forward(x, params, *, bm=2048, use_bf16=True):
    """Fused MLP forward.

    x:        [B, idim] float32
    params:   (w1,b1,w2,b2,w3,b3) with w_i: [in, out], b_i: [1, out]
    bm:       batch tile (rows per grid step). Sweep 1024/2048/4096; default 2048.
    use_bf16: cast matmul operands to bf16 (f32 accumulation). False = exact f32 mode.
    """
    w1, b1, w2, b2, w3, b3 = params
    B, idim = x.shape
    h0 = w1.shape[1]
    h1 = w2.shape[1]
    odim = w3.shape[1]

    is_v7, num_tc = _chip_info()

    # --- batch tiling --------------------------------------------------------
    # Big tiles amortize the ~0.35 us/step grid overhead and fill the MXU M dim.
    # Cap on v7x (64 MiB physical VMEM) vs v5e/v6e (128 MiB).
    bm = _round_up(max(8, min(bm, 4096 if is_v7 else 8192)), 8)

    grid_n = pl.cdiv(B, bm)
    if num_tc == 2:
        # v7x: give both TensorCores an even share when there is enough work.
        if grid_n == 1 and B >= 1024:
            grid_n = 2
        elif grid_n > 1 and grid_n % 2 == 1:
            grid_n += 1
    bm_eff = max(8, _round_up(pl.cdiv(B, grid_n), 8))
    grid_n = pl.cdiv(B, bm_eff)  # final; guarantees no fully-empty tail tile.
    # Ragged tail tile: Pallas masks OOB output writes; OOB input rows are garbage but
    # each output row depends only on its own input row, so valid rows are unaffected.

    # --- output lane padding: only when it pays off --------------------------
    if odim % 128 == 0 or odim < 64:
        odim_out = odim
        w3_p, b3_p = w3, b3
    else:
        odim_out = _round_up(odim, 128)
        w3_p = jnp.pad(w3, ((0, 0), (0, odim_out - odim)))
        b3_p = jnp.pad(b3, ((0, 0), (0, odim_out - odim)))

    # --- bf16 matmul operands (weights cast once; tiny, VMEM-resident) -------
    w_dtype = jnp.bfloat16 if use_bf16 else jnp.float32
    w1c = w1.astype(w_dtype)
    w2c = w2.astype(w_dtype)
    w3c = w3_p.astype(w_dtype)
    w_bytes = jnp.dtype(w_dtype).itemsize

    def full(shape):
        # whole-array block, same for every grid step -> fetched once, stays in VMEM
        return pl.BlockSpec(shape, lambda i: (0, 0))

    # --- cost estimate + VMEM budget ------------------------------------------
    flops = 2 * B * (idim * h0 + h0 * h1 + h1 * odim_out)
    transcendentals = B * (h0 + h1)  # one tanh per hidden element
    bytes_accessed = (B * (idim + odim_out) * 4
                      + (idim * h0 + h0 * h1 + h1 * odim_out) * w_bytes
                      + (h0 + h1 + odim_out) * 4)

    vmem_est = (bm_eff * idim * 4 * 2                       # x tile, double-buffered
                + bm_eff * odim_out * 4 * 2                 # out tile, double-buffered
                + bm_eff * (h0 + h1) * 4 * 2                # f32 intermediates
                + bm_eff * (idim + h0 + h1) * w_bytes       # bf16 operand copies
                + (idim * h0 + h0 * h1 + h1 * odim_out) * w_bytes * 2
                + (h0 + h1 + odim_out) * 4 * 2)
    vmem_cap = (48 << 20) if is_v7 else (100 << 20)
    vmem_limit = int(min(max(32 << 20, 2 * vmem_est), vmem_cap))

    out = pl.pallas_call(
        _mlp_kernel,
        out_shape=jax.ShapeDtypeStruct((B, odim_out), x.dtype),
        grid_spec=pl.GridSpec(
            grid=(grid_n,),
            in_specs=[
                pl.BlockSpec((bm_eff, idim), lambda i: (i, 0)),   # x tile
                full((idim, h0)), full((1, h0)),                   # layer 1
                full((h0, h1)), full((1, h1)),                     # layer 2
                full((h1, odim_out)), full((1, odim_out)),         # output layer
            ],
            out_specs=pl.BlockSpec((bm_eff, odim_out), lambda i: (i, 0)),
        ),
        compiler_params=pltpu.CompilerParams(
            dimension_semantics=("parallel",),
            vmem_limit_bytes=vmem_limit,
        ),
        cost_estimate=pl.CostEstimate(
            flops=flops, transcendentals=transcendentals, bytes_accessed=bytes_accessed),
    )(x, w1c, b1, w2c, b2, w3c, b3_p)

    return out if odim_out == odim else out[:, :odim]


def init_params(key, idim, odim, hidden=(128, 128)):
    """Deterministic PyTorch-Linear-style init: U(-1/sqrt(fan_in), 1/sqrt(fan_in))."""
    dims = [idim, *hidden, odim]
    params = []
    for fan_in, fan_out in zip(dims[:-1], dims[1:]):
        key, kw, kb = jax.random.split(key, 3)
        bound = 1.0 / jnp.sqrt(fan_in)
        # stored as [in, out] so the kernel computes x @ W + b
        w = jax.random.uniform(kw, (fan_in, fan_out), jnp.float32, -bound, bound)
        b = jax.random.uniform(kb, (1, fan_out), jnp.float32, -bound, bound)
        params += [w, b]
    return tuple(params)


def net_forward_ref(x, params):
    """Plain-JAX f32 reference of the same forward pass."""
    w1, b1, w2, b2, w3, b3 = params
    h = jax.nn.sigmoid(x @ w1 + b1)
    h = jax.nn.sigmoid(h @ w2 + b2)
    return h @ w3 + b3


if __name__ == "__main__":
    idim, odim = 32, 16
    hidden = (128, 128)
    batch = 8

    key = jax.random.PRNGKey(0)
    key, kx = jax.random.split(key)
    x = jax.random.normal(kx, (batch, idim), jnp.float32)
    params = init_params(key, idim, odim, hidden)
    ref = net_forward_ref(x, params)

    # bf16-operand fast path (default): slightly looser tolerance vs f32 reference
    out = jax.block_until_ready(net_forward(x, params))
    assert out.shape == (batch, odim)
    assert jnp.allclose(out, ref, atol=3e-2, rtol=3e-2), "mismatch vs reference (bf16)"

    # exact f32 mode
    out_f32 = jax.block_until_ready(net_forward(x, params, use_bf16=False))
    assert jnp.allclose(out_f32, ref, atol=1e-4, rtol=1e-4), "mismatch vs reference (f32)"

    # ragged, larger batch exercises the multi-tile + masked-tail path
    key, kx2 = jax.random.split(key)
    x2 = jax.random.normal(kx2, (300, idim), jnp.float32)  # not a multiple of the tile
    out2 = jax.block_until_ready(net_forward(x2, params, bm=256))
    ref2 = net_forward_ref(x2, params)
    assert out2.shape == (300, odim)
    assert jnp.allclose(out2, ref2, atol=3e-2, rtol=3e-2), "mismatch vs reference (ragged)"

    print("KERNEL_OK")
</pallas_src>

<mosaic_0001>
module attributes {stable_mosaic.version = 11 : i64} {
  func.func @_mlp_kernel(%arg0: i32, %arg1: memref<8x32xf32, #tpu.memory_space<vmem>>, %arg2: memref<32x128xbf16, #tpu.memory_space<vmem>>, %arg3: memref<1x128xf32, #tpu.memory_space<vmem>>, %arg4: memref<128x128xbf16, #tpu.memory_space<vmem>>, %arg5: memref<1x128xf32, #tpu.memory_space<vmem>>, %arg6: memref<128x16xbf16, #tpu.memory_space<vmem>>, %arg7: memref<1x16xf32, #tpu.memory_space<vmem>>, %arg8: memref<8x16xf32, #tpu.memory_space<vmem>>) attributes {dimension_semantics = [#tpu.dimension_semantics<parallel>], iteration_bounds = array<i64: 1>, scalar_prefetch = 0 : i64, scratch_operands = 0 : i64, tpu.core_type = #tpu.core_type<tc>, window_params = [{transform_indices = @transform_0, window_bounds = array<i64: 8, 32>}, {pipeline_mode = #tpu.pipeline_mode<synchronous>, transform_indices = @transform_1, window_bounds = array<i64: 32, 128>}, {pipeline_mode = #tpu.pipeline_mode<synchronous>, transform_indices = @transform_2, window_bounds = array<i64: 1, 128>}, {pipeline_mode = #tpu.pipeline_mode<synchronous>, transform_indices = @transform_3, window_bounds = array<i64: 128, 128>}, {pipeline_mode = #tpu.pipeline_mode<synchronous>, transform_indices = @transform_4, window_bounds = array<i64: 1, 128>}, {pipeline_mode = #tpu.pipeline_mode<synchronous>, transform_indices = @transform_5, window_bounds = array<i64: 128, 16>}, {pipeline_mode = #tpu.pipeline_mode<synchronous>, transform_indices = @transform_6, window_bounds = array<i64: 1, 16>}, {transform_indices = @transform_7, window_bounds = array<i64: 8, 16>}]} {
    %c0 = arith.constant 0 : index
    %c0_0 = arith.constant 0 : index
    %0 = vector.load %arg1[%c0, %c0_0] : memref<8x32xf32, #tpu.memory_space<vmem>>, vector<8x32xf32>
    %1 = arith.truncf %0 : vector<8x32xf32> to vector<8x32xbf16>
    %c0_1 = arith.constant 0 : index
    %c0_2 = arith.constant 0 : index
    %2 = vector.load %arg2[%c0_1, %c0_2] : memref<32x128xbf16, #tpu.memory_space<vmem>>, vector<32x128xbf16>
    %cst = arith.constant dense<0.000000e+00> : vector<8x128xf32>
    %3 = tpu.matmul %1, %2, %cst {dimension_numbers = #tpu.dot_dimension_numbers<[1], [0], [0], [1], [0, 0, 1, 1], [], []>} : vector<8x32xbf16>, vector<32x128xbf16>, vector<8x128xf32> -> vector<8x128xf32>
    %c0_3 = arith.constant 0 : index
    %c0_4 = arith.constant 0 : index
    %4 = vector.load %arg3[%c0_3, %c0_4] : memref<1x128xf32, #tpu.memory_space<vmem>>, vector<1x128xf32>
    %5 = vector.broadcast %4 : vector<1x128xf32> to vector<8x128xf32>
    %6 = arith.addf %3, %5 : vector<8x128xf32>
    %cst_5 = arith.constant 5.000000e-01 : f32
    %7 = vector.broadcast %cst_5 : f32 to vector<8x128xf32>
    %8 = arith.mulf %7, %6 : vector<8x128xf32>
    %9 = math.tanh %8 : vector<8x128xf32>
    %cst_6 = arith.constant 5.000000e-01 : f32
    %10 = vector.broadcast %cst_6 : f32 to vector<8x128xf32>
    %11 = arith.mulf %10, %9 : vector<8x128xf32>
    %cst_7 = arith.constant 5.000000e-01 : f32
    %12 = vector.broadcast %cst_7 : f32 to vector<8x128xf32>
    %13 = arith.addf %11, %12 : vector<8x128xf32>
    %14 = arith.truncf %13 : vector<8x128xf32> to vector<8x128xbf16>
    %c0_8 = arith.constant 0 : index
    %c0_9 = arith.constant 0 : index
    %15 = vector.load %arg4[%c0_8, %c0_9] : memref<128x128xbf16, #tpu.memory_space<vmem>>, vector<128x128xbf16>
    %cst_10 = arith.constant dense<0.000000e+00> : vector<8x128xf32>
    %16 = tpu.matmul %14, %15, %cst_10 {dimension_numbers = #tpu.dot_dimension_numbers<[1], [0], [0], [1], [0, 0, 1, 1], [], []>} : vector<8x128xbf16>, vector<128x128xbf16>, vector<8x128xf32> -> vector<8x128xf32>
    %c0_11 = arith.constant 0 : index
    %c0_12 = arith.constant 0 : index
    %17 = vector.load %arg5[%c0_11, %c0_12] : memref<1x128xf32, #tpu.memory_space<vmem>>, vector<1x128xf32>
    %18 = vector.broadcast %17 : vector<1x128xf32> to vector<8x128xf32>
    %19 = arith.addf %16, %18 : vector<8x128xf32>
    %cst_13 = arith.constant 5.000000e-01 : f32
    %20 = vector.broadcast %cst_13 : f32 to vector<8x128xf32>
    %21 = arith.mulf %20, %19 : vector<8x128xf32>
    %22 = math.tanh %21 : vector<8x128xf32>
    %cst_14 = arith.constant 5.000000e-01 : f32
    %23 = vector.broadcast %cst_14 : f32 to vector<8x128xf32>
    %24 = arith.mulf %23, %22 : vector<8x128xf32>
    %cst_15 = arith.constant 5.000000e-01 : f32
    %25 = vector.broadcast %cst_15 : f32 to vector<8x128xf32>
    %26 = arith.addf %24, %25 : vector<8x128xf32>
    %27 = arith.truncf %26 : vector<8x128xf32> to vector<8x128xbf16>
    %c0_16 = arith.constant 0 : index
    %c0_17 = arith.constant 0 : index
    %28 = vector.load %arg6[%c0_16, %c0_17] : memref<128x16xbf16, #tpu.memory_space<vmem>>, vector<128x16xbf16>
    %cst_18 = arith.constant dense<0.000000e+00> : vector<8x16xf32>
    %29 = tpu.matmul %27, %28, %cst_18 {dimension_numbers = #tpu.dot_dimension_numbers<[1], [0], [0], [1], [0, 0, 1, 1], [], []>} : vector<8x128xbf16>, vector<128x16xbf16>, vector<8x16xf32> -> vector<8x16xf32>
    %c0_19 = arith.constant 0 : index
    %c0_20 = arith.constant 0 : index
    %30 = vector.load %arg7[%c0_19, %c0_20] : memref<1x16xf32, #tpu.memory_space<vmem>>, vector<1x16xf32>
    %31 = vector.broadcast %30 : vector<1x16xf32> to vector<8x16xf32>
    %32 = arith.addf %29, %31 : vector<8x16xf32>
    %c0_21 = arith.constant 0 : index
    %c0_22 = arith.constant 0 : index
    %33 = vector.load %arg8[%c0_21, %c0_22] : memref<8x16xf32, #tpu.memory_space<vmem>>, vector<8x16xf32>
    tpu.vector_store %arg8[%c0_21, %c0_22], %32 {strides = array<i32>} : memref<8x16xf32, #tpu.memory_space<vmem>>, vector<8x16xf32>,
    return
  }
  func.func @transform_0(%arg0: i32) -> (i32, i32) {
    %c0_i32 = arith.constant 0 : i32
    %c0_i32_0 = arith.constant 0 : i32
    return %arg0, %c0_i32 : i32, i32
  }
  func.func @transform_1(%arg0: i32) -> (i32, i32) {
    %c0_i32 = arith.constant 0 : i32
    %c0_i32_0 = arith.constant 0 : i32
    %c0_i32_1 = arith.constant 0 : i32
    return %c0_i32, %c0_i32_0 : i32, i32
  }
  func.func @transform_2(%arg0: i32) -> (i32, i32) {
    %c0_i32 = arith.constant 0 : i32
    %c0_i32_0 = arith.constant 0 : i32
    %c0_i32_1 = arith.constant 0 : i32
    return %c0_i32, %c0_i32_0 : i32, i32
  }
  func.func @transform_3(%arg0: i32) -> (i32, i32) {
    %c0_i32 = arith.constant 0 : i32
    %c0_i32_0 = arith.constant 0 : i32
    %c0_i32_1 = arith.constant 0 : i32
    return %c0_i32, %c0_i32_0 : i32, i32
  }
  func.func @transform_4(%arg0: i32) -> (i32, i32) {
    %c0_i32 = arith.constant 0 : i32
    %c0_i32_0 = arith.constant 0 : i32
    %c0_i32_1 = arith.constant 0 : i32
    return %c0_i32, %c0_i32_0 : i32, i32
  }
  func.func @transform_5(%arg0: i32) -> (i32, i32) {
    %c0_i32 = arith.constant 0 : i32
    %c0_i32_0 = arith.constant 0 : i32
    %c0_i32_1 = arith.constant 0 : i32
    return %c0_i32, %c0_i32_0 : i32, i32
  }
  func.func @transform_6(%arg0: i32) -> (i32, i32) {
    %c0_i32 = arith.constant 0 : i32
    %c0_i32_0 = arith.constant 0 : i32
    %c0_i32_1 = arith.constant 0 : i32
    return %c0_i32, %c0_i32_0 : i32, i32
  }
  func.func @transform_7(%arg0: i32) -> (i32, i32) {
    %c0_i32 = arith.constant 0 : i32
    %c0_i32_0 = arith.constant 0 : i32
    return %arg0, %c0_i32 : i32, i32
  }
}

</mosaic_0001>

<llo_original>
// kernel: tpu_custom_call.1
$region0: #{tpu_custom_call.1}
  #allocation0 [shape = 'u32[]', space=smem, size = 0x4, offset = 0x4, fixed_abs, tag = 'smem constant byte address 0x4 - core index']
  #allocation1 [shape = 'u32[144,128]{1,0:T(1,128)}', space=vmem, size = 0x12000, scoped, tag = 'internal scratch']
  %s0 = inlined_call_operand.hbm [shape: f32[8,32], index: 0, kind: input, shape index: {}]
  %s1 = inlined_call_operand.vmem [shape: bf16[32,128], index: 1, kind: input, shape index: {}]
  %s2 = inlined_call_operand.vmem [shape: f32[1,128], index: 2, kind: input, shape index: {}]
  %s3 = inlined_call_operand.vmem [shape: bf16[128,128], index: 3, kind: input, shape index: {}]
  %s4 = inlined_call_operand.vmem [shape: f32[1,128], index: 4, kind: input, shape index: {}]
  %s5 = inlined_call_operand.vmem [shape: bf16[128,16], index: 5, kind: input, shape index: {}]
  %s6 = inlined_call_operand.vmem [shape: f32[1,16], index: 6, kind: input, shape index: {}]
  %s7 = inlined_call_operand.hbm [shape: f32[8,16], index: 7, kind: output, shape index: {}]
  %s8 = sld [smem:[#allocation0]]
  $region42: #{tpu_custom_call.1} parent=0
    _
  %s10 = ssub.s32 1, %s8
  %s11 = scalar_select 0, %s10, %s8
  $region1: #{tpu_custom_call.1} parent=0
    #allocation2 [shape = 'u8[4096]{0}', space=vmem, size = 0x1000, scoped, tag = 'input window, operand 0, single buffered']
    #allocation3 [shape = 's32[1]{0}', space=sflag, size = 0x4, scoped, tag = 'scoped memory for tpu_custom_call.1']
    #allocation4 [shape = 's32[1]{0}', space=sflag, size = 0x4, scoped, tag = 'scoped memory for tpu_custom_call.1']
    #allocation5 [shape = 'u8[4096]{0}', space=vmem, size = 0x1000, scoped, tag = 'output window, operand 0, single buffered']
    %12 = vsyncpa [#allocation3], 0
    %13 = vsyncpa [#allocation4], 0
    // Predicated region
    $region2: #{tpu_custom_call.1} parent=1 // pred_check
      _
    $region3: #{tpu_custom_call.1} parent=1 // pred_check_branch
      %15 = sbr.rel (0) target = $region5
    $region4: #{tpu_custom_call.1} parent=1 // pred_region
      %s17 = ssub.s32 128, 128
      %18 = vsyncadd [#allocation3], %s17
      %s20 = sshll.u32 [#allocation2], 4
      %s21 = int_to_ptr.vmem [resolvable:$true] %s20
      %23 = dma.hbm_to_vmem [thread:$0]  %s0, 128, %s21, [#allocation3]
    $region5: #{tpu_custom_call.1} parent=1 // pred_fallthru
      _
    // Predicated region
    $region6: #{tpu_custom_call.1} parent=1 // pred_check
      _
    $region7: #{tpu_custom_call.1} parent=1 // pred_check_branch
      %25 = sbr.rel (0) target = $region9
    $region8: #{tpu_custom_call.1} parent=1 // pred_region
      _
    $region9: #{tpu_custom_call.1} parent=1 // pred_fallthru
      _
    // Predicated region
    $region10: #{tpu_custom_call.1} parent=1 // pred_check
      _
    $region11: #{tpu_custom_call.1} parent=1 // pred_check_branch
      %27 = sbr.rel (0) target = $region13
    $region12: #{tpu_custom_call.1} parent=1 // pred_region
      _
    $region13: #{tpu_custom_call.1} parent=1 // pred_fallthru
      _
    // Predicated region
    $region14: #{tpu_custom_call.1} parent=1 // pred_check
      _
    $region15: #{tpu_custom_call.1} parent=1 // pred_check_branch
      %29 = sbr.rel (0) target = $region17
    $region16: #{tpu_custom_call.1} parent=1 // pred_region
      _
    $region17: #{tpu_custom_call.1} parent=1 // pred_fallthru
      _
    // Predicated region
    $region18: #{tpu_custom_call.1} parent=1 // pred_check
      _
    $region19: #{tpu_custom_call.1} parent=1 // pred_check_branch
      %31 = sbr.rel (0) target = $region21
    $region20: #{tpu_custom_call.1} parent=1 // pred_region
      _
    $region21: #{tpu_custom_call.1} parent=1 // pred_fallthru
      _
    // Predicated region
    $region22: #{tpu_custom_call.1} parent=1 // pred_check
      _
    $region23: #{tpu_custom_call.1} parent=1 // pred_check_branch
      %33 = sbr.rel (0) target = $region25
    $region24: #{tpu_custom_call.1} parent=1 // pred_region
      _
    $region25: #{tpu_custom_call.1} parent=1 // pred_fallthru
      _
    // Predicated region
    $region26: #{tpu_custom_call.1} parent=1 // pred_check
      _
    $region27: #{tpu_custom_call.1} parent=1 // pred_check_branch
      %35 = sbr.rel (0) target = $region29
    $region28: #{tpu_custom_call.1} parent=1 // pred_region
      _
    $region29: #{tpu_custom_call.1} parent=1 // pred_fallthru
      _
    // Predicated region
    $region30: #{tpu_custom_call.1} parent=1 // pred_check
      _
    $region31: #{tpu_custom_call.1} parent=1 // pred_check_branch
      %37 = sbr.rel (0) target = $region33
    $region32: #{tpu_custom_call.1} parent=1 // pred_region
      %38 = dma.done [#allocation3], 128
    $region33: #{tpu_custom_call.1} parent=1 // pred_fallthru
      _
    %v40 = vld [vmem:[#allocation2] sm:$0xff]
    %v41 = vpack.c.bf16 %v40, %v40
    %v42 = vld [vmem:[%s1] sm:$0xf]
    %v43 = vld [vmem:[%s1 + $0x4] sm:$0xf]
    %v44 = vld [vmem:[%s1 + $0x8] sm:$0xf]
    %v45 = vld [vmem:[%s1 + $0xc] sm:$0xf]
    %v46 = vld [vmem:[%s2] sm:$0x1]
    %v48 = vlaneseq
    %v49 = vshrl.u32 %v48, 7
    %v50 = vsub.s32 0, %v49
    %v51 = vrot.slane %v46, %v50
    %v57 = vunpack.c.l.b16 %v42
    %v58 = vunpack.c.l.b16 %v43
    %v59 = vunpack.c.l.b16 %v44
    %v60 = vunpack.c.l.b16 %v45
    %v61 = vpack.c.b16 %v58, %v57
    %v62 = vpack.c.b16 %v60, %v59
    %vm65 = vcmask 261120
    %v67 = vsel %vm65, %v41, 0
    %69 = vmatprep.subr.bf16.mxu0 0
    %70 = vmatpush1.bf16.msra.mxu0 %v61
    %71 = vmatprep.subr.bf16.mxu0 0
    %72 = vmatpush1.bf16.msra.mxu0 %v62
    %73 = vmatprep.subr.bf16.mxu0 0
    %74 = vmatpush1.bf16.msra.mxu0 0
    %75 = vmatprep.subr.bf16.mxu0 0
    %76 = vmatpush1.bf16.msra.mxu0 0
    %77 = vmatprep.subr.bf16.mxu0 0
    %78 = vmatpush1.bf16.msra.mxu0 0
    %79 = vmatprep.subr.bf16.mxu0 0
    %80 = vmatpush1.bf16.msra.mxu0 0
    %81 = vmatprep.subr.bf16.mxu0 0
    %82 = vmatpush1.bf16.msra.mxu0 0
    %83 = vmatprep.subr.bf16.mxu0 0
    %84 = vmatpush1.bf16.msra.mxu0 0
    %85 = vmatprep.subr.bf16.mxu0 0
    %86 = vmatpush1.bf16.msra.mxu0 0
    %87 = vmatprep.subr.bf16.mxu0 0
    %88 = vmatpush1.bf16.msra.mxu0 0
    %89 = vmatprep.subr.bf16.mxu0 0
    %90 = vmatpush1.bf16.msra.mxu0 0
    %91 = vmatprep.subr.bf16.mxu0 0
    %92 = vmatpush1.bf16.msra.mxu0 0
    %93 = vmatprep.subr.bf16.mxu0 0
    %94 = vmatpush1.bf16.msra.mxu0 0
    %95 = vmatprep.subr.bf16.mxu0 0
    %96 = vmatpush1.bf16.msra.mxu0 0
    %97 = vmatprep.subr.bf16.mxu0 0
    %98 = vmatpush1.bf16.msra.mxu0 0
    %99 = vmatprep.subr.bf16.mxu0 0
    %100 = vmatpush1.bf16.msra.mxu0 0
    %101 = vmatprep.mubr.bf16.mxu0 0
    %102 = vmatmul.mubr.bf16.gmra.mrb[0].mxu0 %v67
    %v103 = vpop.f32.mrb[0].mxu0
    %v104 = vadd.f32 %v51, %v103
    %v105 = vpop.f32.mrb[0].mxu0
    %v106 = vpop.f32.mrb[0].mxu0
    %v107 = vpop.f32.mrb[0].mxu0
    %108 = vdwg.mxu0
    %v109 = vmul.f32 %v104, 0.5
    %v110 = vtanh.pop %v109
    %v111 = vmul.f32 %v110, 0.5
    %v112 = vadd.f32 %v111, 0.5
    %v113 = vpack.c.bf16 %v112, %v112
    %v114 = vld [vmem:[%s3] sm:$0xf]
    %v115 = vld [vmem:[%s3 + $0x4] sm:$0xf]
    %v116 = vld [vmem:[%s3 + $0x8] sm:$0xf]
    %v117 = vld [vmem:[%s3 + $0xc] sm:$0xf]
    %v118 = vld [vmem:[%s3 + $0x10] sm:$0xf]
    %v119 = vld [vmem:[%s3 + $0x14] sm:$0xf]
    %v120 = vld [vmem:[%s3 + $0x18] sm:$0xf]
    %v121 = vld [vmem:[%s3 + $0x1c] sm:$0xf]
    %v122 = vld [vmem:[%s3 + $0x20] sm:$0xf]
    %v123 = vld [vmem:[%s3 + $0x24] sm:$0xf]
    %v124 = vld [vmem:[%s3 + $0x28] sm:$0xf]
    %v125 = vld [vmem:[%s3 + $0x2c] sm:$0xf]
    %v126 = vld [vmem:[%s3 + $0x30] sm:$0xf]
    %v127 = vld [vmem:[%s3 + $0x34] sm:$0xf]
    %v128 = vld [vmem:[%s3 + $0x38] sm:$0xf]
    %v129 = vld [vmem:[%s3 + $0x3c] sm:$0xf]
    %v130 = vld [vmem:[%s4] sm:$0x1]
    %v132 = vlaneseq
    %v133 = vshrl.u32 %v132, 7
    %v134 = vsub.s32 0, %v133
    %v135 = vrot.slane %v130, %v134
    %v153 = vunpack.c.l.b16 %v114
    %v154 = vunpack.c.l.b16 %v115
    %v155 = vunpack.c.l.b16 %v116
    %v156 = vunpack.c.l.b16 %v117
    %v157 = vunpack.c.l.b16 %v118
    %v158 = vunpack.c.l.b16 %v119
    %v159 = vunpack.c.l.b16 %v120
    %v160 = vunpack.c.l.b16 %v121
    %v161 = vunpack.c.l.b16 %v122
    %v162 = vunpack.c.l.b16 %v123
    %v163 = vunpack.c.l.b16 %v124
    %v164 = vunpack.c.l.b16 %v125
    %v165 = vunpack.c.l.b16 %v126
    %v166 = vunpack.c.l.b16 %v127
    %v167 = vunpack.c.l.b16 %v128
    %v168 = vunpack.c.l.b16 %v129
    %v169 = vpack.c.b16 %v154, %v153
    %v170 = vpack.c.b16 %v156, %v155
    %v171 = vpack.c.b16 %v158, %v157
    %v172 = vpack.c.b16 %v160, %v159
    %v173 = vpack.c.b16 %v162, %v161
    %v174 = vpack.c.b16 %v164, %v163
    %v175 = vpack.c.b16 %v166, %v165
    %v176 = vpack.c.b16 %v168, %v167
    %185 = vmatprep.subr.bf16.mxu0 0
    %186 = vmatpush1.bf16.msra.mxu0 %v169
    %187 = vmatprep.subr.bf16.mxu0 0
    %188 = vmatpush1.bf16.msra.mxu0 %v170
    %189 = vmatprep.subr.bf16.mxu0 0
    %190 = vmatpush1.bf16.msra.mxu0 %v171
    %191 = vmatprep.subr.bf16.mxu0 0
    %192 = vmatpush1.bf16.msra.mxu0 %v172
    %193 = vmatprep.subr.bf16.mxu0 0
    %194 = vmatpush1.bf16.msra.mxu0 %v173
    %195 = vmatprep.subr.bf16.mxu0 0
    %196 = vmatpush1.bf16.msra.mxu0 %v174
    %197 = vmatprep.subr.bf16.mxu0 0
    %198 = vmatpush1.bf16.msra.mxu0 %v175
    %199 = vmatprep.subr.bf16.mxu0 0
    %200 = vmatpush1.bf16.msra.mxu0 %v176
    %201 = vmatprep.subr.bf16.mxu0 0
    %202 = vmatpush1.bf16.msra.mxu0 0
    %203 = vmatprep.subr.bf16.mxu0 0
    %204 = vmatpush1.bf16.msra.mxu0 0
    %205 = vmatprep.subr.bf16.mxu0 0
    %206 = vmatpush1.bf16.msra.mxu0 0
    %207 = vmatprep.subr.bf16.mxu0 0
    %208 = vmatpush1.bf16.msra.mxu0 0
    %209 = vmatprep.subr.bf16.mxu0 0
    %210 = vmatpush1.bf16.msra.mxu0 0
    %211 = vmatprep.subr.bf16.mxu0 0
    %212 = vmatpush1.bf16.msra.mxu0 0
    %213 = vmatprep.subr.bf16.mxu0 0
    %214 = vmatpush1.bf16.msra.mxu0 0
    %215 = vmatprep.subr.bf16.mxu0 0
    %216 = vmatpush1.bf16.msra.mxu0 0
    %217 = vmatprep.mubr.bf16.mxu0 0
    %218 = vmatmul.mubr.bf16.gmra.mrb[0].mxu0 %v113
    %v219 = vpop.f32.mrb[0].mxu0
    %v220 = vadd.f32 %v135, %v219
    %v221 = vpop.f32.mrb[0].mxu0
    %v222 = vpop.f32.mrb[0].mxu0
    %v223 = vpop.f32.mrb[0].mxu0
    %224 = vdwg.mxu0
    %v225 = vmul.f32 %v220, 0.5
    %v226 = vtanh.pop %v225
    %v227 = vmul.f32 %v226, 0.5
    %v228 = vadd.f32 %v227, 0.5
    %v229 = vpack.c.bf16 %v228, %v228
    %v230 = vld [vmem:[%s5] sm:$0xf]
    %v231 = vld [vmem:[%s5 + $0x4] sm:$0xf]
    %v232 = vld [vmem:[%s5 + $0x8] sm:$0xf]
    %v233 = vld [vmem:[%s5 + $0xc] sm:$0xf]
    %v234 = vld [vmem:[%s5 + $0x10] sm:$0xf]
    %v235 = vld [vmem:[%s5 + $0x14] sm:$0xf]
    %v236 = vld [vmem:[%s5 + $0x18] sm:$0xf]
    %v237 = vld [vmem:[%s5 + $0x1c] sm:$0xf]
    %v238 = vld [vmem:[%s5 + $0x20] sm:$0xf]
    %v239 = vld [vmem:[%s5 + $0x24] sm:$0xf]
    %v240 = vld [vmem:[%s5 + $0x28] sm:$0xf]
    %v241 = vld [vmem:[%s5 + $0x2c] sm:$0xf]
    %v242 = vld [vmem:[%s5 + $0x30] sm:$0xf]
    %v243 = vld [vmem:[%s5 + $0x34] sm:$0xf]
    %v244 = vld [vmem:[%s5 + $0x38] sm:$0xf]
    %v245 = vld [vmem:[%s5 + $0x3c] sm:$0xf]
    %v246 = vld [vmem:[%s6] sm:$0x1]
    %v248 = vlaneseq
    %v249 = vshrl.u32 %v248, 7
    %v250 = vsub.s32 0, %v249
    %v251 = vrot.slane %v246, %v250
    %v269 = vunpack.c.l.b16 %v230
    %v270 = vunpack.c.l.b16 %v231
    %v271 = vunpack.c.l.b16 %v232
    %v272 = vunpack.c.l.b16 %v233
    %v273 = vunpack.c.l.b16 %v234
    %v274 = vunpack.c.l.b16 %v235
    %v275 = vunpack.c.l.b16 %v236
    %v276 = vunpack.c.l.b16 %v237
    %v277 = vunpack.c.l.b16 %v238
    %v278 = vunpack.c.l.b16 %v239
    %v279 = vunpack.c.l.b16 %v240
    %v280 = vunpack.c.l.b16 %v241
    %v281 = vunpack.c.l.b16 %v242
    %v282 = vunpack.c.l.b16 %v243
    %v283 = vunpack.c.l.b16 %v244
    %v284 = vunpack.c.l.b16 %v245
    %v285 = vpack.c.b16 %v270, %v269
    %v286 = vpack.c.b16 %v272, %v271
    %v287 = vpack.c.b16 %v274, %v273
    %v288 = vpack.c.b16 %v276, %v275
    %v289 = vpack.c.b16 %v278, %v277
    %v290 = vpack.c.b16 %v280, %v279
    %v291 = vpack.c.b16 %v282, %v281
    %v292 = vpack.c.b16 %v284, %v283
    %301 = vmatprep.subr.bf16.mxu0 0
    %302 = vmatpush1.bf16.msra.mxu0 %v285
    %303 = vmatprep.subr.bf16.mxu0 0
    %304 = vmatpush1.bf16.msra.mxu0 %v286
    %305 = vmatprep.subr.bf16.mxu0 0
    %306 = vmatpush1.bf16.msra.mxu0 %v287
    %307 = vmatprep.subr.bf16.mxu0 0
    %308 = vmatpush1.bf16.msra.mxu0 %v288
    %309 = vmatprep.subr.bf16.mxu0 0
    %310 = vmatpush1.bf16.msra.mxu0 %v289
    %311 = vmatprep.subr.bf16.mxu0 0
    %312 = vmatpush1.bf16.msra.mxu0 %v290
    %313 = vmatprep.subr.bf16.mxu0 0
    %314 = vmatpush1.bf16.msra.mxu0 %v291
    %315 = vmatprep.subr.bf16.mxu0 0
    %316 = vmatpush1.bf16.msra.mxu0 %v292
    %317 = vmatprep.subr.bf16.mxu0 0
    %318 = vmatpush1.bf16.msra.mxu0 0
    %319 = vmatprep.subr.bf16.mxu0 0
    %320 = vmatpush1.bf16.msra.mxu0 0
    %321 = vmatprep.subr.bf16.mxu0 0
    %322 = vmatpush1.bf16.msra.mxu0 0
    %323 = vmatprep.subr.bf16.mxu0 0
    %324 = vmatpush1.bf16.msra.mxu0 0
    %325 = vmatprep.subr.bf16.mxu0 0
    %326 = vmatpush1.bf16.msra.mxu0 0
    %327 = vmatprep.subr.bf16.mxu0 0
    %328 = vmatpush1.bf16.msra.mxu0 0
    %329 = vmatprep.subr.bf16.mxu0 0
    %330 = vmatpush1.bf16.msra.mxu0 0
    %331 = vmatprep.subr.bf16.mxu0 0
    %332 = vmatpush1.bf16.msra.mxu0 0
    %333 = vmatprep.mubr.bf16.mxu0 0
    %334 = vmatmul.mubr.bf16.gmra.mrb[0].mxu0 %v229
    %v335 = vpop.f32.mrb[0].mxu0
    %v336 = vadd.f32 %v251, %v335
    %v337 = vpop.f32.mrb[0].mxu0
    %v338 = vpop.f32.mrb[0].mxu0
    %v339 = vpop.f32.mrb[0].mxu0
    %340 = vdwg.mxu0
    %vm341 = vcmask 130048
    %342 = vst.msk [vmem:[#allocation5] sm:$0xff] %vm341, %v336
    // Predicated region
    $region34: #{tpu_custom_call.1} parent=1 // pred_check
      _
    $region35: #{tpu_custom_call.1} parent=1 // pred_check_branch
      %344 = sbr.rel (0) target = $region37
    $region36: #{tpu_custom_call.1} parent=1 // pred_region
      %s346 = ssub.s32 128, 128
      %347 = vsyncadd [#allocation4], %s346
      %s349 = sshll.u32 [#allocation5], 4
      %s350 = int_to_ptr.vmem [resolvable:$true] %s349
      %352 = dma.vmem_to_hbm [thread:$0]  %s350, 128, %s7, [#allocation4]
    $region37: #{tpu_custom_call.1} parent=1 // pred_fallthru
      _
    // Predicated region
    $region38: #{tpu_custom_call.1} parent=1 // pred_check
      _
    $region39: #{tpu_custom_call.1} parent=1 // pred_check_branch
      %354 = sbr.rel (0) target = $region41
    $region40: #{tpu_custom_call.1} parent=1 // pred_region
      %355 = dma.done [#allocation4], 128
    $region41: #{tpu_custom_call.1} parent=1 // pred_fallthru
      _
    %356 = vsyncpa [#allocation3], 1
    %357 = vsyncpa [#allocation4], 1

</llo_original>
